<compile_context>
chip_gen: v6e
topology: v6e:2x2x1
jax: 0.10.0
libtpu: 0.0.40
codegen_flags: <defaults>
</compile_context>

<pallas_src>
import functools

import jax
import jax.numpy as jnp
from jax import lax
from jax.experimental import pallas as pl
from jax.experimental.pallas import tpu as pltpu


_CHUNK = 8                                 # planes per inner step == accumulator sublane depth
_TARGET_BLOCK_BYTES = 8 * 1024 * 1024      # >= 4 MiB of DMA per grid step (native dtype)
_VMEM_BUDGET_BYTES = 40 * 1024 * 1024      # working-set budget (safe within v7x's 64 MiB)
_VMEM_LIMIT_BYTES = 48 * 1024 * 1024


def _round_up(x, m):
    return (x + m - 1) // m * m


def _sf_kernel(x_ref, racc_ref, cacc_ref, *, w, num_chunks, unroll):
    # x_ref:    (P, Lp) block of flattened planes in native dtype, P = num_chunks * _CHUNK.
    # racc_ref: (_CHUNK, Lp) f32 — unmasked per-lane partial sums of row-diff^2.
    # cacc_ref: (_CHUNK, Lp) f32 — unmasked per-lane partial sums of col-diff^2.
    # Both outputs keep the same block index across the inner ("arbitrary") grid
    # axis, so they stay resident in VMEM and act as accumulators.  Boundary /
    # wrap-around lanes are excluded by per-lane masks in the JAX glue outside.
    j = pl.program_id(1)

    @pl.when(j == 0)
    def _():
        racc_ref[...] = jnp.zeros_like(racc_ref)
        cacc_ref[...] = jnp.zeros_like(cacc_ref)

    lp = x_ref.shape[-1]

    def chunk_body(c, carry):
        off = pl.multiple_of(c * _CHUNK, _CHUNK)
        xc = x_ref[pl.ds(off, _CHUNK), :]              # (_CHUNK, Lp), native dtype
        # Lane neighbour (i+1) and row neighbour (i+w) via XLU lane rotation
        # (jnp.roll semantics: out[i] = x[(i + 1) % Lp] / x[(i + w) % Lp]).
        nxt_col = pltpu.roll(xc, lp - 1, axis=1)
        nxt_row = pltpu.roll(xc, lp - w, axis=1)
        cd = (xc - nxt_col).astype(jnp.float32)        # native-dtype subtract, f32 accumulate
        rd = (xc - nxt_row).astype(jnp.float32)
        racc_ref[...] += rd * rd
        cacc_ref[...] += cd * cd
        return carry

    lax.fori_loop(0, num_chunks, chunk_body, 0, unroll=unroll)


@functools.partial(jax.jit, static_argnames=("num_splits",))
def spatial_frequency_loss(img, num_splits=2):
    """img: (B, C, H, W) -> scalar spatial frequency (matches the PyTorch module)."""
    B, C, H, W = img.shape
    assert H > 1 and W > 1, "spatial frequency needs H > 1 and W > 1"
    N = B * C
    L = H * W
    Lp = _round_up(L, 128)                 # lane-dense last dim, padded to 128 multiple

    # Keep the native dtype; reshape of a contiguous array is free (no HBM pass).
    x = img.reshape(N, L)
    if Lp != L:
        x = jnp.pad(x, ((0, 0), (0, Lp - L)))

    itemsize = jnp.dtype(img.dtype).itemsize
    row_bytes = Lp * itemsize
    # VMEM working set: double-buffered input block + two f32 (8, Lp) accumulators
    # + ~6 chunk-sized f32 temporaries (intermediates don't scale with the block).
    fixed_bytes = 2 * _CHUNK * Lp * 4 + 6 * _CHUNK * Lp * 4
    max_block_bytes = max(_CHUNK * row_bytes, (_VMEM_BUDGET_BYTES - fixed_bytes) // 2)
    target_bytes = min(_TARGET_BLOCK_BYTES, max_block_bytes)
    planes_cap = max(_CHUNK, target_bytes // row_bytes // _CHUNK * _CHUNK)
    # TODO(synk): very large planes (H*W*4B approaching VMEM, e.g. 4K frames) would
    # additionally need tiling along the lane axis; not required for typical sizes.

    planes_per_split = _round_up(pl.cdiv(N, num_splits), _CHUNK)
    P = min(planes_cap, planes_per_split)
    blocks_per_split = pl.cdiv(planes_per_split, P)
    total = num_splits * blocks_per_split * P
    if total != N:
        # All-zero padding planes contribute zero diffs; denominators use the true N.
        x = jnp.pad(x, ((0, total - N), (0, 0)))

    num_chunks = P // _CHUNK
    unroll = num_chunks if num_chunks <= 8 else 8
    kernel = functools.partial(_sf_kernel, w=W, num_chunks=num_chunks, unroll=unroll)

    racc, cacc = pl.pallas_call(
        kernel,
        out_shape=(
            jax.ShapeDtypeStruct((num_splits, _CHUNK, Lp), jnp.float32),
            jax.ShapeDtypeStruct((num_splits, _CHUNK, Lp), jnp.float32),
        ),
        grid_spec=pltpu.PrefetchScalarGridSpec(
            num_scalar_prefetch=0,
            grid=(num_splits, blocks_per_split),
            in_specs=[
                pl.BlockSpec((P, Lp), lambda s, j: (s * blocks_per_split + j, 0)),
            ],
            out_specs=[
                pl.BlockSpec((None, _CHUNK, Lp), lambda s, j: (s, 0, 0)),
                pl.BlockSpec((None, _CHUNK, Lp), lambda s, j: (s, 0, 0)),
            ],
        ),
        compiler_params=pltpu.CompilerParams(
            # On v7x the leading axis should shard the splits across the two
            # TensorCores; if a trace shows otherwise, switch it to
            # pltpu.CORE_PARALLEL.  On 1-TC v5e/v6e it's a harmless serial loop.
            dimension_semantics=("parallel", "arbitrary"),
            vmem_limit_bytes=_VMEM_LIMIT_BYTES,
        ),
    )(x)

    # Per-lane validity masks (dropped lanes: row boundary / wrap-around / pad).
    lane = jnp.arange(Lp)
    row_mask = (lane < (H - 1) * W).astype(jnp.float32)
    col_mask = ((lane % W != W - 1) & (lane < L)).astype(jnp.float32)

    r_sum = jnp.sum(jnp.sum(racc, axis=(0, 1)) * row_mask)
    c_sum = jnp.sum(jnp.sum(cacc, axis=(0, 1)) * col_mask)

    n_row = N * (H - 1) * W     # number of row-diff elements
    n_col = N * H * (W - 1)     # number of col-diff elements
    # sqrt(rf**2 + cf**2) with rf = sqrt(mean(rd**2)), cf = sqrt(mean(cd**2))
    # == sqrt(mean(rd**2) + mean(cd**2))  (exact; avoids sqrt-then-square).
    return jnp.sqrt(r_sum / n_row + c_sum / n_col)


def _reference(img):
    img = img.astype(jnp.float32)
    rd = img[:, :, :-1, :] - img[:, :, 1:, :]
    cd = img[:, :, :, :-1] - img[:, :, :, 1:]
    rf = jnp.sqrt(jnp.mean(rd ** 2))
    cf = jnp.sqrt(jnp.mean(cd ** 2))
    return jnp.sqrt(rf ** 2 + cf ** 2)


if __name__ == "__main__":
    key = jax.random.PRNGKey(0)
    img = jax.random.normal(key, (2, 4, 16, 16), dtype=jnp.float32)

    sf = spatial_frequency_loss(img)
    sf = jax.block_until_ready(sf)

    ref = _reference(img)
    assert jnp.allclose(sf, ref, rtol=1e-5, atol=1e-5), (sf, ref)

    print("KERNEL_OK")
</pallas_src>

<mosaic_0001>
module attributes {stable_mosaic.version = 11 : i64} {
  func.func @_sf_kernel(%arg0: i32, %arg1: i32, %arg2: memref<8x256xf32, #tpu.memory_space<vmem>>, %arg3: memref<1x8x256xf32, #tpu.memory_space<vmem>>, %arg4: memref<1x8x256xf32, #tpu.memory_space<vmem>>) attributes {dimension_semantics = [#tpu.dimension_semantics<parallel>, #tpu.dimension_semantics<arbitrary>], iteration_bounds = array<i64: 2, 1>, scalar_prefetch = 0 : i64, scratch_operands = 0 : i64, tpu.core_type = #tpu.core_type<tc>, window_params = [{transform_indices = @transform_0, window_bounds = array<i64: 8, 256>}, {transform_indices = @transform_1, window_bounds = array<i64: 1, 8, 256>}, {transform_indices = @transform_2, window_bounds = array<i64: 1, 8, 256>}]} {
    %c0_i32 = arith.constant 0 : i32
    %0 = arith.cmpi eq, %arg1, %c0_i32 : i32
    %1 = arith.extui %0 : i1 to i32
    %c0_i32_0 = arith.constant 0 : i32
    %2 = arith.cmpi ne, %1, %c0_i32_0 : i32
    scf.if %2 {
      %cst = arith.constant 0.000000e+00 : f32
      %25 = vector.broadcast %cst : f32 to vector<8x256xf32>
      %c0_14 = arith.constant 0 : index
      %c0_15 = arith.constant 0 : index
      %c0_16 = arith.constant 0 : index
      %26 = vector.load %arg3[%c0_14, %c0_15, %c0_16] : memref<1x8x256xf32, #tpu.memory_space<vmem>>, vector<1x8x256xf32>
      %27 = vector.shape_cast %26 : vector<1x8x256xf32> to vector<8x256xf32>
      %28 = vector.shape_cast %25 : vector<8x256xf32> to vector<1x8x256xf32>
      tpu.vector_store %arg3[%c0_14, %c0_15, %c0_16], %28 {strides = array<i32>} : memref<1x8x256xf32, #tpu.memory_space<vmem>>, vector<1x8x256xf32>,
      %cst_17 = arith.constant 0.000000e+00 : f32
      %29 = vector.broadcast %cst_17 : f32 to vector<8x256xf32>
      %c0_18 = arith.constant 0 : index
      %c0_19 = arith.constant 0 : index
      %c0_20 = arith.constant 0 : index
      %30 = vector.load %arg4[%c0_18, %c0_19, %c0_20] : memref<1x8x256xf32, #tpu.memory_space<vmem>>, vector<1x8x256xf32>
      %31 = vector.shape_cast %30 : vector<1x8x256xf32> to vector<8x256xf32>
      %32 = vector.shape_cast %29 : vector<8x256xf32> to vector<1x8x256xf32>
      tpu.vector_store %arg4[%c0_18, %c0_19, %c0_20], %32 {strides = array<i32>} : memref<1x8x256xf32, #tpu.memory_space<vmem>>, vector<1x8x256xf32>,
    } else {
    }
    %c0_i32_1 = arith.constant 0 : i32
    %c8_i32 = arith.constant 8 : i32
    %3 = arith.muli %c0_i32_1, %c8_i32 : i32
    %4 = tpu.assume_multiple %3, 8 : i32
    %5 = arith.index_cast %4 : i32 to index
    %c0 = arith.constant 0 : index
    %6 = vector.load %arg2[%5, %c0] : memref<8x256xf32, #tpu.memory_space<vmem>>, vector<8x256xf32>
    %c255_i32 = arith.constant 255 : i32
    %7 = tpu.dynamic_rotate %6 by %c255_i32 dim 1 : vector<8x256xf32>, i32 -> vector<8x256xf32>
    %c240_i32 = arith.constant 240 : i32
    %8 = tpu.dynamic_rotate %6 by %c240_i32 dim 1 : vector<8x256xf32>, i32 -> vector<8x256xf32>
    %9 = arith.subf %6, %7 : vector<8x256xf32>
    %10 = arith.subf %6, %8 : vector<8x256xf32>
    %c0_2 = arith.constant 0 : index
    %c0_3 = arith.constant 0 : index
    %c0_4 = arith.constant 0 : index
    %11 = vector.load %arg3[%c0_2, %c0_3, %c0_4] : memref<1x8x256xf32, #tpu.memory_space<vmem>>, vector<1x8x256xf32>
    %12 = vector.shape_cast %11 : vector<1x8x256xf32> to vector<8x256xf32>
    %13 = arith.mulf %10, %10 : vector<8x256xf32>
    %14 = arith.addf %12, %13 : vector<8x256xf32>
    %c0_5 = arith.constant 0 : index
    %c0_6 = arith.constant 0 : index
    %c0_7 = arith.constant 0 : index
    %15 = vector.load %arg3[%c0_5, %c0_6, %c0_7] : memref<1x8x256xf32, #tpu.memory_space<vmem>>, vector<1x8x256xf32>
    %16 = vector.shape_cast %15 : vector<1x8x256xf32> to vector<8x256xf32>
    %17 = vector.shape_cast %14 : vector<8x256xf32> to vector<1x8x256xf32>
    tpu.vector_store %arg3[%c0_5, %c0_6, %c0_7], %17 {strides = array<i32>} : memref<1x8x256xf32, #tpu.memory_space<vmem>>, vector<1x8x256xf32>,
    %c0_8 = arith.constant 0 : index
    %c0_9 = arith.constant 0 : index
    %c0_10 = arith.constant 0 : index
    %18 = vector.load %arg4[%c0_8, %c0_9, %c0_10] : memref<1x8x256xf32, #tpu.memory_space<vmem>>, vector<1x8x256xf32>
    %19 = vector.shape_cast %18 : vector<1x8x256xf32> to vector<8x256xf32>
    %20 = arith.mulf %9, %9 : vector<8x256xf32>
    %21 = arith.addf %19, %20 : vector<8x256xf32>
    %c0_11 = arith.constant 0 : index
    %c0_12 = arith.constant 0 : index
    %c0_13 = arith.constant 0 : index
    %22 = vector.load %arg4[%c0_11, %c0_12, %c0_13] : memref<1x8x256xf32, #tpu.memory_space<vmem>>, vector<1x8x256xf32>
    %23 = vector.shape_cast %22 : vector<1x8x256xf32> to vector<8x256xf32>
    %24 = vector.shape_cast %21 : vector<8x256xf32> to vector<1x8x256xf32>
    tpu.vector_store %arg4[%c0_11, %c0_12, %c0_13], %24 {strides = array<i32>} : memref<1x8x256xf32, #tpu.memory_space<vmem>>, vector<1x8x256xf32>,
    %c1_i32 = arith.constant 1 : i32
    return
  }
  func.func @transform_0(%arg0: i32, %arg1: i32) -> (i32, i32) {
    %c1_i32 = arith.constant 1 : i32
    %0 = arith.muli %arg0, %c1_i32 : i32
    %1 = arith.addi %0, %arg1 : i32
    %c0_i32 = arith.constant 0 : i32
    %c0_i32_0 = arith.constant 0 : i32
    return %1, %c0_i32 : i32, i32
  }
  func.func @transform_1(%arg0: i32, %arg1: i32) -> (i32, i32, i32) {
    %c0_i32 = arith.constant 0 : i32
    %c0_i32_0 = arith.constant 0 : i32
    %c0_i32_1 = arith.constant 0 : i32
    return %arg0, %c0_i32, %c0_i32_0 : i32, i32, i32
  }
  func.func @transform_2(%arg0: i32, %arg1: i32) -> (i32, i32, i32) {
    %c0_i32 = arith.constant 0 : i32
    %c0_i32_0 = arith.constant 0 : i32
    %c0_i32_1 = arith.constant 0 : i32
    return %arg0, %c0_i32, %c0_i32_0 : i32, i32, i32
  }
}

</mosaic_0001>

<llo_original>
// kernel: spatial_frequency_loss.1
$region0: #{spatial_frequency_loss.1}
  #allocation0 [shape = 'u32[]', space=smem, size = 0x4, offset = 0x4, fixed_abs, tag = 'smem constant byte address 0x4 - core index']
  #allocation1 [shape = 'u32[144,128]{1,0:T(1,128)}', space=vmem, size = 0x12000, scoped, tag = 'internal scratch']
  %s0 = inlined_call_operand.vmem [shape: f32[16,256], index: 0, kind: input, shape index: {}]
  %s1 = inlined_call_operand.vmem [shape: f32[2,8,256], index: 1, kind: output, shape index: {0}]
  %s2 = inlined_call_operand.vmem [shape: f32[2,8,256], index: 2, kind: output, shape index: {1}]
  %3 = xla_tuple %s1, %s2
  %s4 = sld [smem:[#allocation0]]
  $region49: #{spatial_frequency_loss.1} parent=0
    _
  %s6 = ssub.s32 1, %s4
  %s7 = scalar_select 0, %s6, %s4
  loop: start=0, step=1, limit=4
  $region2: #{spatial_frequency_loss.1} parent=0 // loop_pre_header
    _
  $region3: #{spatial_frequency_loss.1} parent=0 // loop_header
    %s9 = sphi 0, %s13
    %p10 = scmp.ge.s32.totalorder %s9, 4
    %s16 = sphi 0, %s28
    %s17 = sphi 0, %s24
    %s18 = sphi 0, %s16
    %s19 = sphi 0, %s17
    %s20 = sphi 0, %s18
    %s21 = sphi 0, %s19
    %s33 = sphi 0, %s35
    %s36 = sphi 0, %s33
    %s37 = sphi 0, %s36
    %s53 = sphi 0, %s37
    %s59 = sphi 0, %s61
    %s62 = sphi 0, %s59
    %s63 = sphi 0, %s62
    %s79 = sphi 0, %s63
    %s85 = sphi 0, %s87
    %s88 = sphi 0, %s85
    %s89 = sphi 0, %s88
    %s105 = sphi 0, %s89
  $region4: #{spatial_frequency_loss.1} parent=0 // loop_header_branch
    %12 = sbr.rel (%p10) target = $region8
  $region5: #{spatial_frequency_loss.1} parent=0 // loop_body
    %s14 = ssub.s32 %s9, 1
    %s15 = ssub.s32 %s9, 2
    %s22 = sadd.s32 1, %s17
    %p23 = scmp.ge.s32.totalorder %s22, 1
    %s24 = scalar_select %p23, 0, %s22
    %s25 = sadd.s32 1, %s16
    %s26 = scalar_select %p23, %s25, %s16
    %p27 = scmp.ge.s32.totalorder %s26, 2
    %s28 = scalar_select %p27, 0, %s26
    %s29 = sadd.s32 %s16, %s17
    %s30 = sadd.s32 %s28, %s24
    %s31 = ssub.s32 %s29, %s30
    %p32 = scmp.eq.s32.totalorder %s31, 0
    %s34 = sadd.s32 %s33, 1
    %s35 = scalar_select %p32, %s33, %s34
    %p38 = pneg %p32
    %p39 = scmp.eq.s32.totalorder %s9, 1
    %p40 = por %p38, %p39
    %p41 = scmp.ne.s32.totalorder %s33, %s36
    %p42 = scmp.eq.s32.totalorder %s9, 0
    %p43 = por %p41, %p42
    %p44 = scmp.ne.s32.totalorder %s33, %s36
    %p45 = scmp.eq.s32.totalorder %s14, 1
    %p46 = por %p44, %p45
    %p47 = scmp.ne.s32.totalorder %s36, %s37
    %p48 = scmp.eq.s32.totalorder %s14, 0
    %p49 = por %p47, %p48
    %p50 = scmp.ne.s32.totalorder %s36, %s37
    %p51 = scmp.eq.s32.totalorder %s15, 1
    %p52 = por %p50, %p51
    %p54 = scmp.ne.s32.totalorder %s37, %s53
    %p55 = scmp.eq.s32.totalorder %s15, 0
    %p56 = por %p54, %p55
    %s57 = ssub.s32 %s16, %s28
    %p58 = scmp.eq.s32.totalorder %s57, 0
    %s60 = sadd.s32 %s59, 1
    %s61 = scalar_select %p58, %s59, %s60
    %p64 = pneg %p58
    %p65 = scmp.eq.s32.totalorder %s9, 1
    %p66 = por %p64, %p65
    %p67 = scmp.ne.s32.totalorder %s59, %s62
    %p68 = scmp.eq.s32.totalorder %s9, 0
    %p69 = por %p67, %p68
    %p70 = scmp.ne.s32.totalorder %s59, %s62
    %p71 = scmp.eq.s32.totalorder %s14, 1
    %p72 = por %p70, %p71
    %p73 = scmp.ne.s32.totalorder %s62, %s63
    %p74 = scmp.eq.s32.totalorder %s14, 0
    %p75 = por %p73, %p74
    %p76 = scmp.ne.s32.totalorder %s62, %s63
    %p77 = scmp.eq.s32.totalorder %s15, 1
    %p78 = por %p76, %p77
    %p80 = scmp.ne.s32.totalorder %s63, %s79
    %p81 = scmp.eq.s32.totalorder %s15, 0
    %p82 = por %p80, %p81
    %s83 = ssub.s32 %s16, %s28
    %p84 = scmp.eq.s32.totalorder %s83, 0
    %s86 = sadd.s32 %s85, 1
    %s87 = scalar_select %p84, %s85, %s86
    %p90 = pneg %p84
    %p91 = scmp.eq.s32.totalorder %s9, 1
    %p92 = por %p90, %p91
    %p93 = scmp.ne.s32.totalorder %s85, %s88
    %p94 = scmp.eq.s32.totalorder %s9, 0
    %p95 = por %p93, %p94
    %p96 = scmp.ne.s32.totalorder %s85, %s88
    %p97 = scmp.eq.s32.totalorder %s14, 1
    %p98 = por %p96, %p97
    %p99 = scmp.ne.s32.totalorder %s88, %s89
    %p100 = scmp.eq.s32.totalorder %s14, 0
    %p101 = por %p99, %p100
    %p102 = scmp.ne.s32.totalorder %s88, %s89
    %p103 = scmp.eq.s32.totalorder %s15, 1
    %p104 = por %p102, %p103
    %p106 = scmp.ne.s32.totalorder %s89, %s105
    %p107 = scmp.eq.s32.totalorder %s15, 0
    %p108 = por %p106, %p107
    %p109 = scmp.le.s32.totalorder 1, %s9
    %p110 = scmp.lt.s32.totalorder %s9, 3
    %p111 = pnand %p109, %p110
    %p112 = pneg %p111
    // Predicated region
    $region9: #{spatial_frequency_loss.1} parent=5 // pred_check
      _
    $region10: #{spatial_frequency_loss.1} parent=5 // pred_check_branch
      %114 = sbr.rel (%p111) target = $region12
    $region11: #{spatial_frequency_loss.1} parent=5 // pred_region
      %s115 = ssub.s32 %s9, 1
    $region12: #{spatial_frequency_loss.1} parent=5 // pred_fallthru
      _
    %p116 = scmp.lt.s32.totalorder %s9, 2
    // Predicated region
    $region13: #{spatial_frequency_loss.1} parent=5 // pred_check
      %p117 = pneg %p116
    $region14: #{spatial_frequency_loss.1} parent=5 // pred_check_branch
      %119 = sbr.rel (%p117) target = $region16
    $region15: #{spatial_frequency_loss.1} parent=5 // pred_region
      // Predicated region
      $region17: #{spatial_frequency_loss.1} parent=15 // pred_check
        %p120 = pneg %p43
      $region18: #{spatial_frequency_loss.1} parent=15 // pred_check_branch
        %122 = sbr.rel (%p120) target = $region20
      $region19: #{spatial_frequency_loss.1} parent=15 // pred_region
        %s123 = sadd.s32 %s16, %s17
        %p124 = scmp.lt.s32.totalorder %s123, 1
        %s125 = scalar_select %p124, %s123, 1
        %s126 = smul.addr %s125, 2
        %s127 = smul.addr %s126, 8
        %s128 = scalar_lea.vmem %s0, %s127
        %s129 = sadd.s32 %s16, %s17
      $region20: #{spatial_frequency_loss.1} parent=15 // pred_fallthru
        _
    $region16: #{spatial_frequency_loss.1} parent=5 // pred_fallthru
      _
    %p130 = scmp.le.s32.totalorder 1, %s9
    %p131 = scmp.lt.s32.totalorder %s9, 3
    %p132 = pnand %p130, %p131
    %p133 = pneg %p132
    // Predicated region
    $region21: #{spatial_frequency_loss.1} parent=5 // pred_check
      _
    $region22: #{spatial_frequency_loss.1} parent=5 // pred_check_branch
      %135 = sbr.rel (%p132) target = $region24
    $region23: #{spatial_frequency_loss.1} parent=5 // pred_region
      %s136 = ssub.s32 %s9, 1
      %s137 = sadd.s32 %s18, %s19
      %p138 = scmp.lt.s32.totalorder %s137, 1
      %s139 = scalar_select %p138, %s137, 1
      %s140 = smul.addr %s139, 2
      %s141 = smul.addr %s140, 8
      %s142 = scalar_lea.vmem %s0, %s141
      %p143 = pneg %p49
      %p144 = pneg %p46
      %p145 = pneg %p75
      %p146 = pneg %p72
      %p147 = scmp.lt.s32.totalorder %s18, 1
      %s148 = scalar_select %p147, %s18, 1
      %s149 = smul.addr %s148, 2
      %s150 = smul.addr %s149, 8
      %s151 = scalar_lea.vmem %s1, %s150
      %p152 = pneg %p101
      %p153 = pneg %p98
      %p154 = scmp.lt.s32.totalorder %s18, 1
      %s155 = scalar_select %p154, %s18, 1
      %s156 = smul.addr %s155, 2
      %s157 = smul.addr %s156, 8
      %s158 = scalar_lea.vmem %s2, %s157
      %s159 = sadd.s32 %s18, %s19
      %p160 = scmp.lt.s32.totalorder %s159, 1
      %s161 = scalar_select %p160, %s159, 1
      %s162 = smul.addr %s161, 2
      %s163 = smul.addr %s162, 8
      %s164 = scalar_lea.vmem %s0, %s163
      %s165 = sadd.s32 %s18, %s19
      %p166 = scmp.lt.s32.totalorder %s18, 1
      %s167 = scalar_select %p166, %s18, 1
      %s168 = smul.addr %s167, 2
      %s169 = smul.addr %s168, 8
      %s170 = scalar_lea.vmem %s1, %s169
      %p171 = scmp.lt.s32.totalorder %s18, 1
      %s172 = scalar_select %p171, %s18, 1
      %s173 = smul.addr %s172, 2
      %s174 = smul.addr %s173, 8
      %s175 = scalar_lea.vmem %s2, %s174
      %p176 = scmp.eq.s32.totalorder %s19, 0
      // Predicated region
      $region25: #{spatial_frequency_loss.1} parent=23 // pred_check
        %p177 = pneg %p176
      $region26: #{spatial_frequency_loss.1} parent=23 // pred_check_branch
        %179 = sbr.rel (%p177) target = $region28
      $region27: #{spatial_frequency_loss.1} parent=23 // pred_region
        %180 = vst [vmem:[%s170] sm:$0xff] 0.0
        %181 = vst [vmem:[%s170 + $0x8] sm:$0xff] 0.0
        %182 = vst [vmem:[%s175] sm:$0xff] 0.0
        %183 = vst [vmem:[%s175 + $0x8] sm:$0xff] 0.0
      $region28: #{spatial_frequency_loss.1} parent=23 // pred_fallthru
        _
      %s184 = smul.u32 0, 2
      %s185 = smul.addr %s184, 8
      %s186 = scalar_lea.vmem %s164, %s185
      %v187 = vld [vmem:[%s186] sm:$0xff]
      %v188 = vld [vmem:[%s186 + $0x8] sm:$0xff]
      %189 = vrot.lane.b32.xlu0 %v187, 127
      %v190 = vpop.permute.xlu0 %189
      %191 = vrot.lane.b32.xlu0 %v188, 127
      %v192 = vpop.permute.xlu0 %191
      %v193 = vlaneseq
      %v194 = vand.u32 %v193, 127
      %vm195 = vcmp.lt.s32.totalorder %v194, 127
      %v196 = vsel %vm195, %v190, %v192
      %v197 = vsel %vm195, %v192, %v190
      %198 = vrot.lane.b32.xlu0 %v187, 112
      %v199 = vpop.permute.xlu0 %198
      %200 = vrot.lane.b32.xlu0 %v188, 112
      %v201 = vpop.permute.xlu0 %200
      %vm202 = vcmp.lt.s32.totalorder %v194, 112
      %v203 = vsel %vm202, %v199, %v201
      %v204 = vsel %vm202, %v201, %v199
      %v205 = vsub.f32 %v187, %v196
      %v206 = vsub.f32 %v188, %v197
      %v207 = vsub.f32 %v187, %v203
      %v208 = vsub.f32 %v188, %v204
      %v209 = vld [vmem:[%s170] sm:$0xff]
      %v210 = vld [vmem:[%s170 + $0x8] sm:$0xff]
      %v211 = vmul.f32 %v207, %v207
      %v212 = vmul.f32 %v208, %v208
      %v213 = vadd.f32 %v209, %v211
      %v214 = vadd.f32 %v210, %v212
      %215 = vst [vmem:[%s170] sm:$0xff] %v213
      %216 = vst [vmem:[%s170 + $0x8] sm:$0xff] %v214
      %v217 = vld [vmem:[%s175] sm:$0xff]
      %v218 = vld [vmem:[%s175 + $0x8] sm:$0xff]
      %v219 = vmul.f32 %v205, %v205
      %v220 = vmul.f32 %v206, %v206
      %v221 = vadd.f32 %v217, %v219
      %v222 = vadd.f32 %v218, %v220
      %223 = vst [vmem:[%s175] sm:$0xff] %v221
      %224 = vst [vmem:[%s175 + $0x8] sm:$0xff] %v222
      %p225 = scmp.lt.s32.totalorder %s18, 1
      %s226 = scalar_select %p225, %s18, 1
      %s227 = smul.addr %s226, 2
      %s228 = smul.addr %s227, 8
      %s229 = scalar_lea.vmem %s1, %s228
      %p230 = scmp.lt.s32.totalorder %s18, 1
      %s231 = scalar_select %p230, %s18, 1
      %s232 = smul.addr %s231, 2
      %s233 = smul.addr %s232, 8
      %s234 = scalar_lea.vmem %s2, %s233
      // Predicated region
      $region29: #{spatial_frequency_loss.1} parent=23 // pred_check
        %p235 = pneg %p72
      $region30: #{spatial_frequency_loss.1} parent=23 // pred_check_branch
        %237 = sbr.rel (%p235) target = $region32
      $region31: #{spatial_frequency_loss.1} parent=23 // pred_region
        _
      $region32: #{spatial_frequency_loss.1} parent=23 // pred_fallthru
        _
      // Predicated region
      $region33: #{spatial_frequency_loss.1} parent=23 // pred_check
        %p238 = pneg %p98
      $region34: #{spatial_frequency_loss.1} parent=23 // pred_check_branch
        %240 = sbr.rel (%p238) target = $region36
      $region35: #{spatial_frequency_loss.1} parent=23 // pred_region
        _
      $region36: #{spatial_frequency_loss.1} parent=23 // pred_fallthru
        _
    $region24: #{spatial_frequency_loss.1} parent=5 // pred_fallthru
      _
    %p241 = scmp.le.s32.totalorder 2, %s9
    // Predicated region
    $region37: #{spatial_frequency_loss.1} parent=5 // pred_check
      %p242 = pneg %p241
    $region38: #{spatial_frequency_loss.1} parent=5 // pred_check_branch
      %244 = sbr.rel (%p242) target = $region40
    $region39: #{spatial_frequency_loss.1} parent=5 // pred_region
      %s245 = ssub.s32 %s9, 2
      // Predicated region
      $region41: #{spatial_frequency_loss.1} parent=39 // pred_check
        %p246 = pneg %p78
      $region42: #{spatial_frequency_loss.1} parent=39 // pred_check_branch
        %248 = sbr.rel (%p246) target = $region44
      $region43: #{spatial_frequency_loss.1} parent=39 // pred_region
        %p249 = scmp.lt.s32.totalorder %s20, 1
        %s250 = scalar_select %p249, %s20, 1
        %s251 = smul.addr %s250, 2
        %s252 = smul.addr %s251, 8
        %s253 = scalar_lea.vmem %s1, %s252
      $region44: #{spatial_frequency_loss.1} parent=39 // pred_fallthru
        _
      // Predicated region
      $region45: #{spatial_frequency_loss.1} parent=39 // pred_check
        %p254 = pneg %p104
      $region46: #{spatial_frequency_loss.1} parent=39 // pred_check_branch
        %256 = sbr.rel (%p254) target = $region48
      $region47: #{spatial_frequency_loss.1} parent=39 // pred_region
        %p257 = scmp.lt.s32.totalorder %s20, 1
        %s258 = scalar_select %p257, %s20, 1
        %s259 = smul.addr %s258, 2
        %s260 = smul.addr %s259, 8
        %s261 = scalar_lea.vmem %s2, %s260
      $region48: #{spatial_frequency_loss.1} parent=39 // pred_fallthru
        _
    $region40: #{spatial_frequency_loss.1} parent=5 // pred_fallthru
      _
  $region6: #{spatial_frequency_loss.1} parent=0 // loop_footer
    %s13 = sadd.s32 1, %s9
  $region7: #{spatial_frequency_loss.1} parent=0 // loop_footer_branch
    %8 = sbr.rel target = $region3
  $region8: #{spatial_frequency_loss.1} parent=0 // loop_exit
    _

</llo_original>
